<compile_context>
chip_gen: v5e
topology: v5e:2x2
jax: 0.10.0
libtpu: 0.0.40
codegen_flags: <defaults>
</compile_context>

<pallas_src>
import math

import jax
import jax.numpy as jnp
from jax.experimental import pallas as pl
from jax.experimental.pallas import tpu as pltpu

BN_EPS = 1e-5  # nn.BatchNorm1d default eps
LANE = 128


def _round_up(x, m):
    return ((x + m - 1) // m) * m


def _pad2(x, rows, cols):
    x = jnp.asarray(x, jnp.float32)
    return jnp.pad(x, ((0, rows - x.shape[0]), (0, cols - x.shape[1])))


def _bn_relu(x, gamma, beta):
    # Training-mode BatchNorm1d (biased batch variance) + ReLU.
    mu = jnp.mean(x, axis=0, keepdims=True)
    var = jnp.mean((x - mu) * (x - mu), axis=0, keepdims=True)
    y = (x - mu) * jax.lax.rsqrt(var + BN_EPS) * gamma + beta
    return jnp.maximum(y, 0.0)


# ---------------------------------------------------------------------------
# Kernel bodies
# ---------------------------------------------------------------------------
def _gin_fused_kernel(eps_ref, a_ref, v_ref,
                      w1_ref, b1_ref, g1_ref, be1_ref,
                      w2_ref, b2_ref, g2_ref, be2_ref,
                      out_ref):
    """Whole graph in one block: aggregation + MLP + BN(+ReLU), fully fused."""
    a = a_ref[...].astype(jnp.float32)  # bf16 storage -> f32 math (exact for 0/1)
    v = v_ref[...]
    agg = jnp.dot(a, v, preferred_element_type=jnp.float32) + eps_ref[0, 0] * v
    h = jnp.dot(agg, w1_ref[...], preferred_element_type=jnp.float32) + b1_ref[...]
    h = _bn_relu(h, g1_ref[...], be1_ref[...])
    o = jnp.dot(h, w2_ref[...], preferred_element_type=jnp.float32) + b2_ref[...]
    out_ref[...] = _bn_relu(o, g2_ref[...], be2_ref[...])


def _gin_agg_lin1_kernel(eps_ref, a_ref, vk_ref, vi_ref, w1_ref, b1_ref,
                         h_ref, acc_ref):
    """Tiled pass 1: h[i] = (sum_k a[i,k] @ v[k] + eps * v[i]) @ w1 + b1."""
    k = pl.program_id(1)

    @pl.when(k == 0)
    def _():
        acc_ref[...] = jnp.zeros_like(acc_ref)

    acc_ref[...] += jnp.dot(a_ref[...].astype(jnp.float32), vk_ref[...],
                            preferred_element_type=jnp.float32)

    @pl.when(k == pl.num_programs(1) - 1)
    def _():
        agg = acc_ref[...] + eps_ref[0, 0] * vi_ref[...]
        h_ref[...] = (jnp.dot(agg, w1_ref[...], preferred_element_type=jnp.float32)
                      + b1_ref[...])


def _gin_mlp_tail_kernel(h_ref, g1_ref, be1_ref, w2_ref, b2_ref, g2_ref, be2_ref,
                         out_ref):
    """Tiled pass 2: BN1 + ReLU + Linear2 + BN2 + ReLU (global column stats)."""
    h = _bn_relu(h_ref[...], g1_ref[...], be1_ref[...])
    o = jnp.dot(h, w2_ref[...], preferred_element_type=jnp.float32) + b2_ref[...]
    out_ref[...] = _bn_relu(o, g2_ref[...], be2_ref[...])


# ---------------------------------------------------------------------------
# Wrappers
# ---------------------------------------------------------------------------
def _pad_params(params, R, H, O):
    R_pad, H_pad, O_pad = (_round_up(x, LANE) for x in (R, H, O))
    p = {
        "w1": _pad2(params["w1"], R_pad, H_pad),
        "b1": _pad2(params["b1"], 1, H_pad),
        "g1": _pad2(params["g1"], 1, H_pad),    # gamma padded with 0 -> pad cols stay 0
        "be1": _pad2(params["be1"], 1, H_pad),
        "w2": _pad2(params["w2"], H_pad, O_pad),
        "b2": _pad2(params["b2"], 1, O_pad),
        "g2": _pad2(params["g2"], 1, O_pad),
        "be2": _pad2(params["be2"], 1, O_pad),
        "eps": jnp.asarray(params["epsilon"], jnp.float32).reshape(1, 1),
    }
    return p, R_pad, H_pad, O_pad


def layer_gin_pallas(v, a, params, *, tm=512, tk=512, fused_max_n=512,
                     adjacency_bf16=True):
    """Single-graph LayerGIN forward (train-mode BatchNorm semantics).

    adjacency_bf16=True stores `a` in bf16 (exact for 0/1 adjacency); set
    False for arbitrarily weighted adjacency matrices.
    """
    N, R = v.shape
    H = params["w1"].shape[1]
    O = params["w2"].shape[1]
    p, R_pad, H_pad, O_pad = _pad_params(params, R, H, O)

    v_p = _pad2(v, N, R_pad)
    a_dtype = jnp.bfloat16 if adjacency_bf16 else jnp.float32
    a_s = a.astype(a_dtype)

    smem_spec = pl.BlockSpec(memory_space=pltpu.MemorySpace.SMEM)

    if N <= fused_max_n:
        # ---------------- fused single-block path (small graphs) ----------------
        args = (p["eps"], a_s, v_p,
                p["w1"], p["b1"], p["g1"], p["be1"],
                p["w2"], p["b2"], p["g2"], p["be2"])
        in_specs = [smem_spec] + [pl.BlockSpec(x.shape, lambda: (0, 0))
                                  for x in args[1:]]
        cost = pl.CostEstimate(
            flops=2 * N * N * R_pad + 2 * N * R_pad * H_pad + 2 * N * H_pad * O_pad,
            transcendentals=H_pad + O_pad,
            bytes_accessed=int(sum(int(x.size) * x.dtype.itemsize for x in args)
                               + N * O_pad * 4),
        )
        out_p = pl.pallas_call(
            _gin_fused_kernel,
            out_shape=jax.ShapeDtypeStruct((N, O_pad), jnp.float32),
            grid=(),
            in_specs=in_specs,
            out_specs=pl.BlockSpec((N, O_pad), lambda: (0, 0)),
            cost_estimate=cost,
        )(*args)
        return out_p[:, :O]

    # ---------------- tiled two-pass path (large graphs) ----------------
    blk = math.lcm(tm, tk)
    N_pad = _round_up(N, blk)
    a_pp = jnp.pad(a_s, ((0, N_pad - N), (0, N_pad - N)))
    v_pp = jnp.pad(v_p, ((0, N_pad - N), (0, 0)))

    itemsize_a = jnp.dtype(a_dtype).itemsize
    vmem1 = int(1.5 * (2 * tm * tk * itemsize_a      # a tile, double-buffered
                       + 2 * tk * R_pad * 4          # v reduction-view tile
                       + 2 * tm * R_pad * 4          # v self-view tile
                       + 2 * R_pad * H_pad * 4       # w1
                       + 2 * H_pad * 4               # b1
                       + 2 * tm * H_pad * 4          # h output tile
                       + tm * R_pad * 4))            # accumulator scratch
    vmem1 = min(max(vmem1, 32 * 1024 * 1024), 100 * 1024 * 1024)

    cost1 = pl.CostEstimate(
        flops=2 * N_pad * N_pad * R_pad + 2 * N_pad * R_pad * H_pad,
        transcendentals=0,
        bytes_accessed=int(N_pad * N_pad * itemsize_a + 2 * N_pad * R_pad * 4
                           + R_pad * H_pad * 4 + N_pad * H_pad * 4),
    )

    h_pre = pl.pallas_call(
        _gin_agg_lin1_kernel,
        out_shape=jax.ShapeDtypeStruct((N_pad, H_pad), jnp.float32),
        grid=(N_pad // tm, N_pad // tk),
        in_specs=[
            smem_spec,                                          # eps (SMEM scalar)
            pl.BlockSpec((tm, tk), lambda i, k: (i, k)),        # a tile
            pl.BlockSpec((tk, R_pad), lambda i, k: (k, 0)),     # v (reduction view)
            pl.BlockSpec((tm, R_pad), lambda i, k: (i, 0)),     # v (self view)
            pl.BlockSpec((R_pad, H_pad), lambda i, k: (0, 0)),  # w1
            pl.BlockSpec((1, H_pad), lambda i, k: (0, 0)),      # b1
        ],
        out_specs=pl.BlockSpec((tm, H_pad), lambda i, k: (i, 0)),
        scratch_shapes=[pltpu.VMEM((tm, R_pad), jnp.float32)],
        compiler_params=pltpu.CompilerParams(
            dimension_semantics=("parallel", "arbitrary"),
            vmem_limit_bytes=vmem1),
        cost_estimate=cost1,
    )(p["eps"], a_pp, v_pp, v_pp, p["w1"], p["b1"])

    h = h_pre[:N]  # drop padded rows so BatchNorm sees exactly N rows
    tail_args = (h, p["g1"], p["be1"], p["w2"], p["b2"], p["g2"], p["be2"])
    out_p = pl.pallas_call(
        _gin_mlp_tail_kernel,
        out_shape=jax.ShapeDtypeStruct((N, O_pad), jnp.float32),
        grid=(),
        in_specs=[pl.BlockSpec(x.shape, lambda: (0, 0)) for x in tail_args],
        out_specs=pl.BlockSpec((N, O_pad), lambda: (0, 0)),
        cost_estimate=pl.CostEstimate(
            flops=2 * N * H_pad * O_pad,
            transcendentals=H_pad + O_pad,
            bytes_accessed=int(N * (H_pad + 2 * O_pad) * 4 + H_pad * O_pad * 4),
        ),
    )(*tail_args)
    return out_p[:, :O]


def layer_gin_pallas_batched(v, a, params, *, adjacency_bf16=True):
    """Many independent small graphs in ONE pallas_call ('parallel' graph axis).

    Each grid step processes one whole graph, so BatchNorm statistics stay
    per-graph — identical to calling layer_gin_pallas per graph, but amortizes
    launch/DMA overhead and lets v7x's two TensorCores split the batch.
    """
    G, N, R = v.shape
    H = params["w1"].shape[1]
    O = params["w2"].shape[1]
    p, R_pad, H_pad, O_pad = _pad_params(params, R, H, O)

    v_p = jnp.pad(jnp.asarray(v, jnp.float32), ((0, 0), (0, 0), (0, R_pad - R)))
    a_dtype = jnp.bfloat16 if adjacency_bf16 else jnp.float32
    a_s = a.astype(a_dtype)

    in_specs = [
        pl.BlockSpec(memory_space=pltpu.MemorySpace.SMEM),                # eps
        pl.BlockSpec((pl.Squeezed(), N, N), lambda g: (g, 0, 0)),         # a[g]
        pl.BlockSpec((pl.Squeezed(), N, R_pad), lambda g: (g, 0, 0)),     # v[g]
        pl.BlockSpec((R_pad, H_pad), lambda g: (0, 0)),                   # w1
        pl.BlockSpec((1, H_pad), lambda g: (0, 0)),                       # b1
        pl.BlockSpec((1, H_pad), lambda g: (0, 0)),                       # g1
        pl.BlockSpec((1, H_pad), lambda g: (0, 0)),                       # be1
        pl.BlockSpec((H_pad, O_pad), lambda g: (0, 0)),                   # w2
        pl.BlockSpec((1, O_pad), lambda g: (0, 0)),                       # b2
        pl.BlockSpec((1, O_pad), lambda g: (0, 0)),                       # g2
        pl.BlockSpec((1, O_pad), lambda g: (0, 0)),                       # be2
    ]
    out_p = pl.pallas_call(
        _gin_fused_kernel,
        out_shape=jax.ShapeDtypeStruct((G, N, O_pad), jnp.float32),
        grid=(G,),
        in_specs=in_specs,
        out_specs=pl.BlockSpec((pl.Squeezed(), N, O_pad), lambda g: (g, 0, 0)),
        compiler_params=pltpu.CompilerParams(dimension_semantics=("parallel",)),
    )(p["eps"], a_s, v_p, p["w1"], p["b1"], p["g1"], p["be1"],
      p["w2"], p["b2"], p["g2"], p["be2"])
    return out_p[..., :O]


# ---------------------------------------------------------------------------
# Pure-JAX reference (matches the PyTorch module's train() forward)
# ---------------------------------------------------------------------------
def layer_gin_ref(v, a, p):
    eps = jnp.asarray(p["epsilon"], jnp.float32).reshape(())
    agg = a @ v + eps * v
    h = agg @ p["w1"] + p["b1"]
    mu = h.mean(0, keepdims=True)
    var = ((h - mu) ** 2).mean(0, keepdims=True)
    h = jnp.maximum((h - mu) / jnp.sqrt(var + BN_EPS) * p["g1"] + p["be1"], 0.0)
    o = h @ p["w2"] + p["b2"]
    mu = o.mean(0, keepdims=True)
    var = ((o - mu) ** 2).mean(0, keepdims=True)
    return jnp.maximum((o - mu) / jnp.sqrt(var + BN_EPS) * p["g2"] + p["be2"], 0.0)


if __name__ == "__main__":
    key = jax.random.PRNGKey(0)

    def make_params(k, R, H, O):
        ks = jax.random.split(k, 8)
        return {
            "epsilon": jnp.array([[0.25]], jnp.float32),  # nn.Parameter([[...]])
            "w1": 0.1 * jax.random.normal(ks[0], (R, H), jnp.float32),   # Linear1 W^T
            "b1": 0.1 * jax.random.normal(ks[1], (1, H), jnp.float32),
            "g1": 1.0 + 0.1 * jax.random.normal(ks[2], (1, H), jnp.float32),
            "be1": 0.1 * jax.random.normal(ks[3], (1, H), jnp.float32),
            "w2": 0.1 * jax.random.normal(ks[4], (H, O), jnp.float32),   # Linear2 W^T
            "b2": 0.1 * jax.random.normal(ks[5], (1, O), jnp.float32),
            "g2": 1.0 + 0.1 * jax.random.normal(ks[6], (1, O), jnp.float32),
            "be2": 0.1 * jax.random.normal(ks[7], (1, O), jnp.float32),
        }

    k0, k1, k2, k3, k4, k5, k6 = jax.random.split(key, 7)

    # --- Test 1: toy single graph (fused single-block path) -----------------
    N, R, H, O = 16, 16, 32, 32
    v = jax.random.normal(k0, (N, R), jnp.float32)
    a = (jax.random.uniform(k1, (N, N)) > 0.7).astype(jnp.float32)  # binary adjacency
    params = make_params(k2, R, H, O)
    out = jax.block_until_ready(layer_gin_pallas(v, a, params))
    ref = layer_gin_ref(v, a, params)
    assert out.shape == (N, O)
    assert jnp.allclose(out, ref, atol=1e-4, rtol=1e-4), float(jnp.abs(out - ref).max())

    # --- Test 2: larger graph exercising the tiled two-pass path ------------
    N2 = 200
    v2 = jax.random.normal(k3, (N2, R), jnp.float32)
    a2 = (jax.random.uniform(k4, (N2, N2)) > 0.8).astype(jnp.float32)
    out2 = jax.block_until_ready(
        layer_gin_pallas(v2, a2, params, tm=128, tk=128, fused_max_n=0))
    ref2 = layer_gin_ref(v2, a2, params)
    assert out2.shape == (N2, O)
    assert jnp.allclose(out2, ref2, atol=1e-4, rtol=1e-4), float(jnp.abs(out2 - ref2).max())

    # --- Test 3: batch of graphs in one pallas_call --------------------------
    G = 4
    vb = jax.random.normal(k5, (G, N, R), jnp.float32)
    ab = (jax.random.uniform(k6, (G, N, N)) > 0.7).astype(jnp.float32)
    outb = jax.block_until_ready(layer_gin_pallas_batched(vb, ab, params))
    refb = jnp.stack([layer_gin_ref(vb[g], ab[g], params) for g in range(G)])
    assert outb.shape == (G, N, O)
    assert jnp.allclose(outb, refb, atol=1e-4, rtol=1e-4), float(jnp.abs(outb - refb).max())

    print("KERNEL_OK")
</pallas_src>

<mosaic_0001>
module attributes {stable_mosaic.version = 11 : i64} {
  func.func @_gin_fused_kernel(%arg0: memref<1x1xf32, #tpu.memory_space<smem>>, %arg1: memref<16x16xbf16, #tpu.memory_space<vmem>>, %arg2: memref<16x128xf32, #tpu.memory_space<vmem>>, %arg3: memref<128x128xf32, #tpu.memory_space<vmem>>, %arg4: memref<1x128xf32, #tpu.memory_space<vmem>>, %arg5: memref<1x128xf32, #tpu.memory_space<vmem>>, %arg6: memref<1x128xf32, #tpu.memory_space<vmem>>, %arg7: memref<128x128xf32, #tpu.memory_space<vmem>>, %arg8: memref<1x128xf32, #tpu.memory_space<vmem>>, %arg9: memref<1x128xf32, #tpu.memory_space<vmem>>, %arg10: memref<1x128xf32, #tpu.memory_space<vmem>>, %arg11: memref<16x128xf32, #tpu.memory_space<vmem>>) attributes {dimension_semantics = [], scalar_prefetch = 0 : i64, scratch_operands = 0 : i64, tpu.core_type = #tpu.core_type<tc>} {
    %c0 = arith.constant 0 : index
    %c0_0 = arith.constant 0 : index
    %0 = vector.load %arg1[%c0, %c0_0] : memref<16x16xbf16, #tpu.memory_space<vmem>>, vector<16x16xbf16>
    %1 = arith.extf %0 : vector<16x16xbf16> to vector<16x16xf32>
    %c0_1 = arith.constant 0 : index
    %c0_2 = arith.constant 0 : index
    %2 = vector.load %arg2[%c0_1, %c0_2] : memref<16x128xf32, #tpu.memory_space<vmem>>, vector<16x128xf32>
    %cst = arith.constant dense<0.000000e+00> : vector<16x128xf32>
    %3 = tpu.matmul %1, %2, %cst {dimension_numbers = #tpu.dot_dimension_numbers<[1], [0], [0], [1], [0, 0, 1, 1], [], []>} : vector<16x16xf32>, vector<16x128xf32>, vector<16x128xf32> -> vector<16x128xf32>
    %c0_3 = arith.constant 0 : index
    %c0_4 = arith.constant 0 : index
    %4 = memref.load %arg0[%c0_3, %c0_4] : memref<1x1xf32, #tpu.memory_space<smem>>
    %5 = vector.broadcast %4 : f32 to vector<16x128xf32>
    %6 = arith.mulf %5, %2 : vector<16x128xf32>
    %7 = arith.addf %3, %6 : vector<16x128xf32>
    %c0_5 = arith.constant 0 : index
    %c0_6 = arith.constant 0 : index
    %8 = vector.load %arg3[%c0_5, %c0_6] : memref<128x128xf32, #tpu.memory_space<vmem>>, vector<128x128xf32>
    %cst_7 = arith.constant dense<0.000000e+00> : vector<16x128xf32>
    %9 = tpu.matmul %7, %8, %cst_7 {dimension_numbers = #tpu.dot_dimension_numbers<[1], [0], [0], [1], [0, 0, 1, 1], [], []>} : vector<16x128xf32>, vector<128x128xf32>, vector<16x128xf32> -> vector<16x128xf32>
    %c0_8 = arith.constant 0 : index
    %c0_9 = arith.constant 0 : index
    %10 = vector.load %arg4[%c0_8, %c0_9] : memref<1x128xf32, #tpu.memory_space<vmem>>, vector<1x128xf32>
    %11 = vector.broadcast %10 : vector<1x128xf32> to vector<16x128xf32>
    %12 = arith.addf %9, %11 : vector<16x128xf32>
    %c0_10 = arith.constant 0 : index
    %c0_11 = arith.constant 0 : index
    %13 = vector.load %arg5[%c0_10, %c0_11] : memref<1x128xf32, #tpu.memory_space<vmem>>, vector<1x128xf32>
    %c0_12 = arith.constant 0 : index
    %c0_13 = arith.constant 0 : index
    %14 = vector.load %arg6[%c0_12, %c0_13] : memref<1x128xf32, #tpu.memory_space<vmem>>, vector<1x128xf32>
    %cst_14 = arith.constant dense<0.000000e+00> : vector<128xf32>
    %15 = vector.multi_reduction <add>, %12, %cst_14 [0] : vector<16x128xf32> to vector<128xf32>
    %16 = vector.shape_cast %15 : vector<128xf32> to vector<1x128xf32>
    %cst_15 = arith.constant 1.600000e+01 : f32
    %17 = vector.broadcast %cst_15 : f32 to vector<1x128xf32>
    %18 = arith.divf %16, %17 : vector<1x128xf32>
    %19 = vector.broadcast %18 : vector<1x128xf32> to vector<16x128xf32>
    %20 = arith.subf %12, %19 : vector<16x128xf32>
    %21 = vector.broadcast %18 : vector<1x128xf32> to vector<16x128xf32>
    %22 = arith.subf %12, %21 : vector<16x128xf32>
    %23 = arith.mulf %20, %22 : vector<16x128xf32>
    %cst_16 = arith.constant dense<0.000000e+00> : vector<128xf32>
    %24 = vector.multi_reduction <add>, %23, %cst_16 [0] : vector<16x128xf32> to vector<128xf32>
    %25 = vector.shape_cast %24 : vector<128xf32> to vector<1x128xf32>
    %cst_17 = arith.constant 1.600000e+01 : f32
    %26 = vector.broadcast %cst_17 : f32 to vector<1x128xf32>
    %27 = arith.divf %25, %26 : vector<1x128xf32>
    %28 = vector.broadcast %18 : vector<1x128xf32> to vector<16x128xf32>
    %29 = arith.subf %12, %28 : vector<16x128xf32>
    %cst_18 = arith.constant 9.99999974E-6 : f32
    %30 = vector.broadcast %cst_18 : f32 to vector<1x128xf32>
    %31 = arith.addf %27, %30 : vector<1x128xf32>
    %32 = math.rsqrt %31 : vector<1x128xf32>
    %33 = vector.broadcast %32 : vector<1x128xf32> to vector<16x128xf32>
    %34 = arith.mulf %29, %33 : vector<16x128xf32>
    %35 = vector.broadcast %13 : vector<1x128xf32> to vector<16x128xf32>
    %36 = arith.mulf %34, %35 : vector<16x128xf32>
    %37 = vector.broadcast %14 : vector<1x128xf32> to vector<16x128xf32>
    %38 = arith.addf %36, %37 : vector<16x128xf32>
    %cst_19 = arith.constant 0.000000e+00 : f32
    %39 = vector.broadcast %cst_19 : f32 to vector<16x128xf32>
    %40 = arith.maximumf %38, %39 : vector<16x128xf32>
    %c0_20 = arith.constant 0 : index
    %c0_21 = arith.constant 0 : index
    %41 = vector.load %arg7[%c0_20, %c0_21] : memref<128x128xf32, #tpu.memory_space<vmem>>, vector<128x128xf32>
    %cst_22 = arith.constant dense<0.000000e+00> : vector<16x128xf32>
    %42 = tpu.matmul %40, %41, %cst_22 {dimension_numbers = #tpu.dot_dimension_numbers<[1], [0], [0], [1], [0, 0, 1, 1], [], []>} : vector<16x128xf32>, vector<128x128xf32>, vector<16x128xf32> -> vector<16x128xf32>
    %c0_23 = arith.constant 0 : index
    %c0_24 = arith.constant 0 : index
    %43 = vector.load %arg8[%c0_23, %c0_24] : memref<1x128xf32, #tpu.memory_space<vmem>>, vector<1x128xf32>
    %44 = vector.broadcast %43 : vector<1x128xf32> to vector<16x128xf32>
    %45 = arith.addf %42, %44 : vector<16x128xf32>
    %c0_25 = arith.constant 0 : index
    %c0_26 = arith.constant 0 : index
    %46 = vector.load %arg9[%c0_25, %c0_26] : memref<1x128xf32, #tpu.memory_space<vmem>>, vector<1x128xf32>
    %c0_27 = arith.constant 0 : index
    %c0_28 = arith.constant 0 : index
    %47 = vector.load %arg10[%c0_27, %c0_28] : memref<1x128xf32, #tpu.memory_space<vmem>>, vector<1x128xf32>
    %cst_29 = arith.constant dense<0.000000e+00> : vector<128xf32>
    %48 = vector.multi_reduction <add>, %45, %cst_29 [0] : vector<16x128xf32> to vector<128xf32>
    %49 = vector.shape_cast %48 : vector<128xf32> to vector<1x128xf32>
    %cst_30 = arith.constant 1.600000e+01 : f32
    %50 = vector.broadcast %cst_30 : f32 to vector<1x128xf32>
    %51 = arith.divf %49, %50 : vector<1x128xf32>
    %52 = vector.broadcast %51 : vector<1x128xf32> to vector<16x128xf32>
    %53 = arith.subf %45, %52 : vector<16x128xf32>
    %54 = vector.broadcast %51 : vector<1x128xf32> to vector<16x128xf32>
    %55 = arith.subf %45, %54 : vector<16x128xf32>
    %56 = arith.mulf %53, %55 : vector<16x128xf32>
    %cst_31 = arith.constant dense<0.000000e+00> : vector<128xf32>
    %57 = vector.multi_reduction <add>, %56, %cst_31 [0] : vector<16x128xf32> to vector<128xf32>
    %58 = vector.shape_cast %57 : vector<128xf32> to vector<1x128xf32>
    %cst_32 = arith.constant 1.600000e+01 : f32
    %59 = vector.broadcast %cst_32 : f32 to vector<1x128xf32>
    %60 = arith.divf %58, %59 : vector<1x128xf32>
    %61 = vector.broadcast %51 : vector<1x128xf32> to vector<16x128xf32>
    %62 = arith.subf %45, %61 : vector<16x128xf32>
    %cst_33 = arith.constant 9.99999974E-6 : f32
    %63 = vector.broadcast %cst_33 : f32 to vector<1x128xf32>
    %64 = arith.addf %60, %63 : vector<1x128xf32>
    %65 = math.rsqrt %64 : vector<1x128xf32>
    %66 = vector.broadcast %65 : vector<1x128xf32> to vector<16x128xf32>
    %67 = arith.mulf %62, %66 : vector<16x128xf32>
    %68 = vector.broadcast %46 : vector<1x128xf32> to vector<16x128xf32>
    %69 = arith.mulf %67, %68 : vector<16x128xf32>
    %70 = vector.broadcast %47 : vector<1x128xf32> to vector<16x128xf32>
    %71 = arith.addf %69, %70 : vector<16x128xf32>
    %cst_34 = arith.constant 0.000000e+00 : f32
    %72 = vector.broadcast %cst_34 : f32 to vector<16x128xf32>
    %73 = arith.maximumf %71, %72 : vector<16x128xf32>
    %c0_35 = arith.constant 0 : index
    %c0_36 = arith.constant 0 : index
    %74 = vector.load %arg11[%c0_35, %c0_36] : memref<16x128xf32, #tpu.memory_space<vmem>>, vector<16x128xf32>
    tpu.vector_store %arg11[%c0_35, %c0_36], %73 {strides = array<i32>} : memref<16x128xf32, #tpu.memory_space<vmem>>, vector<16x128xf32>,
    return
  }
}

</mosaic_0001>

<llo_original>
// kernel: tpu_custom_call.1
$region0: #{tpu_custom_call.1}
  #allocation0 [shape = 'u32[]', space=smem, size = 0x4, offset = 0x4, fixed_abs, tag = 'smem constant byte address 0x4 - core index']
  #allocation1 [shape = 'u32[72,128]{1,0:T(1,128)}', space=vmem, size = 0x9000, scoped, tag = 'internal scratch']
  #allocation2 [shape = 'f32[1,1]{1,0:T(1,128)S(6)}', space=smem, size = 0x200, scoped, tag = 'scoped memory for tpu_custom_call.1']
  %s0 = inlined_call_operand.<no memory space> [shape: f32[1,1], index: 0, kind: input, shape index: {}]
  %s1 = inlined_call_operand.hbm [shape: bf16[16,16], index: 1, kind: input, shape index: {}]
  %s2 = inlined_call_operand.hbm [shape: f32[16,128], index: 2, kind: input, shape index: {}]
  %s3 = inlined_call_operand.hbm [shape: f32[128,128], index: 3, kind: input, shape index: {}]
  %s4 = inlined_call_operand.vmem [shape: f32[1,128], index: 4, kind: input, shape index: {}]
  %s5 = inlined_call_operand.vmem [shape: f32[1,128], index: 5, kind: input, shape index: {}]
  %s6 = inlined_call_operand.vmem [shape: f32[1,128], index: 6, kind: input, shape index: {}]
  %s7 = inlined_call_operand.hbm [shape: f32[128,128], index: 7, kind: input, shape index: {}]
  %s8 = inlined_call_operand.vmem [shape: f32[1,128], index: 8, kind: input, shape index: {}]
  %s9 = inlined_call_operand.vmem [shape: f32[1,128], index: 9, kind: input, shape index: {}]
  %s10 = inlined_call_operand.vmem [shape: f32[1,128], index: 10, kind: input, shape index: {}]
  %s11 = inlined_call_operand.hbm [shape: f32[16,128], index: 11, kind: output, shape index: {}]
  %s12 = sld [smem:[#allocation0]]
  $region70: #{tpu_custom_call.1} parent=0
    _
  %s14 = ssub.s32 1, %s12
  %s15 = scalar_select 0, %s14, %s12
  %16 = sst [smem:[#allocation2]] %s0
  $region1: #{tpu_custom_call.1} parent=0
    #allocation3 [shape = 'u8[4096]{0}', space=vmem, size = 0x1000, scoped, tag = 'input window, operand 1, single buffered']
    #allocation4 [shape = 's32[1]{0}', space=sflag, size = 0x4, scoped, tag = 'scoped memory for tpu_custom_call.1']
    #allocation5 [shape = 's32[1]{0}', space=sflag, size = 0x4, scoped, tag = 'scoped memory for tpu_custom_call.1']
    #allocation6 [shape = 'u8[8192]{0}', space=vmem, size = 0x2000, scoped, tag = 'input window, operand 2, single buffered']
    #allocation7 [shape = 's32[1]{0}', space=sflag, size = 0x4, scoped, tag = 'scoped memory for tpu_custom_call.1']
    #allocation8 [shape = 'u8[65536]{0}', space=vmem, size = 0x10000, scoped, tag = 'input window, operand 3, single buffered']
    #allocation9 [shape = 'u8[65536]{0}', space=vmem, size = 0x10000, scoped, tag = 'input window, operand 7, single buffered']
    #allocation10 [shape = 's32[1]{0}', space=sflag, size = 0x4, scoped, tag = 'scoped memory for tpu_custom_call.1']
    #allocation11 [shape = 'u8[8192]{0}', space=vmem, size = 0x2000, scoped, tag = 'output window, operand 0, single buffered']
    %17 = vsyncpa [#allocation4], 0
    %18 = vsyncpa [#allocation7], 0
    %19 = vsyncpa [#allocation10], 0
    %20 = vsyncpa [#allocation5], 0
    // Predicated region
    $region2: #{tpu_custom_call.1} parent=1 // pred_check
      _
    $region3: #{tpu_custom_call.1} parent=1 // pred_check_branch
      %22 = sbr.rel (0) target = $region5
    $region4: #{tpu_custom_call.1} parent=1 // pred_region
      _
    $region5: #{tpu_custom_call.1} parent=1 // pred_fallthru
      _
    // Predicated region
    $region6: #{tpu_custom_call.1} parent=1 // pred_check
      _
    $region7: #{tpu_custom_call.1} parent=1 // pred_check_branch
      %24 = sbr.rel (0) target = $region9
    $region8: #{tpu_custom_call.1} parent=1 // pred_region
      %26 = vsyncadd [#allocation4], 0
      %s27 = sshll.u32 %s1, 4
      %s28 = int_to_ptr.hbm [resolvable:$true] %s27
      %s29 = sshll.u32 [#allocation3], 4
      %s30 = int_to_ptr.vmem [resolvable:$true] %s29
      %35 = dma.hbm_to_vmem [thread:$0]  %s28, 128, %s30, [#allocation4], 64, 64, 4
    $region9: #{tpu_custom_call.1} parent=1 // pred_fallthru
      _
    // Predicated region
    $region10: #{tpu_custom_call.1} parent=1 // pred_check
      _
    $region11: #{tpu_custom_call.1} parent=1 // pred_check_branch
      %37 = sbr.rel (0) target = $region13
    $region12: #{tpu_custom_call.1} parent=1 // pred_region
      %39 = vsyncadd [#allocation7], 0
      %s40 = sshll.u32 %s2, 4
      %s41 = int_to_ptr.hbm [resolvable:$true] %s40
      %s42 = sshll.u32 [#allocation6], 4
      %s43 = int_to_ptr.vmem [resolvable:$true] %s42
      %48 = dma.hbm_to_vmem [thread:$0]  %s41, 256, %s43, [#allocation7], 128, 128, 8
    $region13: #{tpu_custom_call.1} parent=1 // pred_fallthru
      _
    // Predicated region
    $region14: #{tpu_custom_call.1} parent=1 // pred_check
      _
    $region15: #{tpu_custom_call.1} parent=1 // pred_check_branch
      %50 = sbr.rel (0) target = $region17
    $region16: #{tpu_custom_call.1} parent=1 // pred_region
      %52 = vsyncadd [#allocation7], 0
      %s53 = sshll.u32 %s3, 4
      %s54 = int_to_ptr.hbm [resolvable:$true] %s53
      %s55 = sshll.u32 [#allocation8], 4
      %s56 = int_to_ptr.vmem [resolvable:$true] %s55
      %61 = dma.hbm_to_vmem [thread:$0]  %s54, 2048, %s56, [#allocation7], 128, 128, 8
    $region17: #{tpu_custom_call.1} parent=1 // pred_fallthru
      _
    // Predicated region
    $region18: #{tpu_custom_call.1} parent=1 // pred_check
      _
    $region19: #{tpu_custom_call.1} parent=1 // pred_check_branch
      %63 = sbr.rel (0) target = $region21
    $region20: #{tpu_custom_call.1} parent=1 // pred_region
      _
    $region21: #{tpu_custom_call.1} parent=1 // pred_fallthru
      _
    // Predicated region
    $region22: #{tpu_custom_call.1} parent=1 // pred_check
      _
    $region23: #{tpu_custom_call.1} parent=1 // pred_check_branch
      %65 = sbr.rel (0) target = $region25
    $region24: #{tpu_custom_call.1} parent=1 // pred_region
      _
    $region25: #{tpu_custom_call.1} parent=1 // pred_fallthru
      _
    // Predicated region
    $region26: #{tpu_custom_call.1} parent=1 // pred_check
      _
    $region27: #{tpu_custom_call.1} parent=1 // pred_check_branch
      %67 = sbr.rel (0) target = $region29
    $region28: #{tpu_custom_call.1} parent=1 // pred_region
      _
    $region29: #{tpu_custom_call.1} parent=1 // pred_fallthru
      _
    // Predicated region
    $region30: #{tpu_custom_call.1} parent=1 // pred_check
      _
    $region31: #{tpu_custom_call.1} parent=1 // pred_check_branch
      %69 = sbr.rel (0) target = $region33
    $region32: #{tpu_custom_call.1} parent=1 // pred_region
      %71 = vsyncadd [#allocation10], 0
      %s72 = sshll.u32 %s7, 4
      %s73 = int_to_ptr.hbm [resolvable:$true] %s72
      %s74 = sshll.u32 [#allocation9], 4
      %s75 = int_to_ptr.vmem [resolvable:$true] %s74
      %80 = dma.hbm_to_vmem [thread:$0]  %s73, 2048, %s75, [#allocation10], 128, 128, 8
    $region33: #{tpu_custom_call.1} parent=1 // pred_fallthru
      _
    // Predicated region
    $region34: #{tpu_custom_call.1} parent=1 // pred_check
      _
    $region35: #{tpu_custom_call.1} parent=1 // pred_check_branch
      %82 = sbr.rel (0) target = $region37
    $region36: #{tpu_custom_call.1} parent=1 // pred_region
      _
    $region37: #{tpu_custom_call.1} parent=1 // pred_fallthru
      _
    // Predicated region
    $region38: #{tpu_custom_call.1} parent=1 // pred_check
      _
    $region39: #{tpu_custom_call.1} parent=1 // pred_check_branch
      %84 = sbr.rel (0) target = $region41
    $region40: #{tpu_custom_call.1} parent=1 // pred_region
      _
    $region41: #{tpu_custom_call.1} parent=1 // pred_fallthru
      _
    // Predicated region
    $region42: #{tpu_custom_call.1} parent=1 // pred_check
      _
    $region43: #{tpu_custom_call.1} parent=1 // pred_check_branch
      %86 = sbr.rel (0) target = $region45
    $region44: #{tpu_custom_call.1} parent=1 // pred_region
      _
    $region45: #{tpu_custom_call.1} parent=1 // pred_fallthru
      _
    // Predicated region
    $region46: #{tpu_custom_call.1} parent=1 // pred_check
      _
    $region47: #{tpu_custom_call.1} parent=1 // pred_check_branch
      %88 = sbr.rel (0) target = $region49
    $region48: #{tpu_custom_call.1} parent=1 // pred_region
      %90 = dma.done [#allocation4], 128
    $region49: #{tpu_custom_call.1} parent=1 // pred_fallthru
      _
    // Predicated region
    $region50: #{tpu_custom_call.1} parent=1 // pred_check
      _
    $region51: #{tpu_custom_call.1} parent=1 // pred_check_branch
      %92 = sbr.rel (0) target = $region53
    $region52: #{tpu_custom_call.1} parent=1 // pred_region
      %94 = dma.done [#allocation7], 256
    $region53: #{tpu_custom_call.1} parent=1 // pred_fallthru
      _
    // Predicated region
    $region54: #{tpu_custom_call.1} parent=1 // pred_check
      _
    $region55: #{tpu_custom_call.1} parent=1 // pred_check_branch
      %96 = sbr.rel (0) target = $region57
    $region56: #{tpu_custom_call.1} parent=1 // pred_region
      %98 = dma.done [#allocation7], 2048
    $region57: #{tpu_custom_call.1} parent=1 // pred_fallthru
      _
    // Predicated region
    $region58: #{tpu_custom_call.1} parent=1 // pred_check
      _
    $region59: #{tpu_custom_call.1} parent=1 // pred_check_branch
      %100 = sbr.rel (0) target = $region61
    $region60: #{tpu_custom_call.1} parent=1 // pred_region
      %102 = dma.done [#allocation10], 2048
    $region61: #{tpu_custom_call.1} parent=1 // pred_fallthru
      _
    %v103 = vld [vmem:[#allocation3] sm:$0xf]
    %v104 = vld [vmem:[#allocation3 + $0x4] sm:$0xf]
    %v105 = vunpack.c.l.bf16 %v103
    %v106 = vunpack.c.l.bf16 %v104
    %v107 = vld [vmem:[#allocation6] sm:$0xff]
    %v108 = vld [vmem:[#allocation6 + $0x8] sm:$0xff]
    %s109 = sld [smem:[#allocation2]]
    %v110 = vstv %s109
    %v111 = vmul.f32 %v110, %v107
    %v112 = vmul.f32 %v110, %v108
    %vm113 = vcmask 130048
    %v115 = vsel %vm113, %v105, 0
    %v118 = vsel %vm113, %v106, 0
    %120 = vmatpush.msra.mxu0 0.0
    %121 = vmatpush.msra.mxu0 0.0
    %122 = vmatpush.msra.mxu0 0.0
    %123 = vmatpush.msra.mxu0 0.0
    %124 = vmatpush.msra.mxu0 0.0
    %125 = vmatpush.msra.mxu0 0.0
    %126 = vmatpush.msra.mxu0 0.0
    %127 = vmatpush.msra.mxu0 0.0
    %128 = vmatpush.msra.mxu0 0.0
    %129 = vmatpush.msra.mxu0 0.0
    %130 = vmatpush.msra.mxu0 0.0
    %131 = vmatpush.msra.mxu0 0.0
    %132 = vmatpush.msra.mxu0 0.0
    %133 = vmatpush.msra.mxu0 0.0
    %134 = vmatpush.msra.mxu0 %v108
    %135 = vmatpush.msra.mxu0 %v107
    %136 = vmatmul.f32.gmra.mxu0 %v115
    %v137 = vpop.f32.mrf.mxu0
    %v138 = vadd.f32 %v111, %v137
    %139 = vmatmul.f32.gmra.mxu0 %v118
    %v140 = vpop.f32.mrf.mxu0
    %v141 = vadd.f32 %v112, %v140
    %142 = vdwg.mxu0
    %v143 = vld [vmem:[#allocation8] sm:$0xff]
    %v144 = vld [vmem:[#allocation8 + $0x8] sm:$0xff]
    %v145 = vld [vmem:[#allocation8 + $0x10] sm:$0xff]
    %v146 = vld [vmem:[#allocation8 + $0x18] sm:$0xff]
    %v147 = vld [vmem:[#allocation8 + $0x20] sm:$0xff]
    %v148 = vld [vmem:[#allocation8 + $0x28] sm:$0xff]
    %v149 = vld [vmem:[#allocation8 + $0x30] sm:$0xff]
    %v150 = vld [vmem:[#allocation8 + $0x38] sm:$0xff]
    %v151 = vld [vmem:[#allocation8 + $0x40] sm:$0xff]
    %v152 = vld [vmem:[#allocation8 + $0x48] sm:$0xff]
    %v153 = vld [vmem:[#allocation8 + $0x50] sm:$0xff]
    %v154 = vld [vmem:[#allocation8 + $0x58] sm:$0xff]
    %v155 = vld [vmem:[#allocation8 + $0x60] sm:$0xff]
    %v156 = vld [vmem:[#allocation8 + $0x68] sm:$0xff]
    %v157 = vld [vmem:[#allocation8 + $0x70] sm:$0xff]
    %v158 = vld [vmem:[#allocation8 + $0x78] sm:$0xff]
    %v159 = vld [vmem:[%s4] sm:$0x1]
    %v161 = vperm.slane %v159, 0
    %163 = vmatpush.msra.mxu0 %v158
    %164 = vmatpush.msra.mxu0 %v157
    %165 = vmatpush.msra.mxu0 %v156
    %166 = vmatpush.msra.mxu0 %v155
    %167 = vmatpush.msra.mxu0 %v154
    %168 = vmatpush.msra.mxu0 %v153
    %169 = vmatpush.msra.mxu0 %v152
    %170 = vmatpush.msra.mxu0 %v151
    %171 = vmatpush.msra.mxu0 %v150
    %172 = vmatpush.msra.mxu0 %v149
    %173 = vmatpush.msra.mxu0 %v148
    %174 = vmatpush.msra.mxu0 %v147
    %175 = vmatpush.msra.mxu0 %v146
    %176 = vmatpush.msra.mxu0 %v145
    %177 = vmatpush.msra.mxu0 %v144
    %178 = vmatpush.msra.mxu0 %v143
    %179 = vmatmul.f32.gmra.mxu0 %v138
    %v180 = vpop.f32.mrf.mxu0
    %v181 = vadd.f32 %v161, %v180
    %182 = vmatmul.f32.gmra.mxu0 %v141
    %v183 = vpop.f32.mrf.mxu0
    %v184 = vadd.f32 %v161, %v183
    %185 = vdwg.mxu0
    %v186 = vld [vmem:[%s5] sm:$0x1]
    %v187 = vld [vmem:[%s6] sm:$0x1]
    %v188 = vadd.f32 %v181, %v184
    %v189 = vrot.slane %v188, 4
    %v190 = vadd.f32 %v188, %v189
    %v191 = vrot.slane %v190, 2
    %v192 = vadd.f32 %v190, %v191
    %v193 = vrot.slane %v192, 1
    %v194 = vadd.f32 %v192, %v193
    %v195 = vrcp.pop 16.0
    %v196 = vmul.f32 16.0, %v195
    %v197 = vsub.f32 1.0, %v196
    %v198 = vmul.f32 %v195, %v197
    %v199 = vadd.f32 %v195, %v198
    %vm200 = vweird.f32 %v195
    %v201 = vsel %vm200, %v195, %v199
    %v202 = vmul.f32 %v194, %v201
    %v203 = vsub.f32 %v181, %v202
    %v204 = vsub.f32 %v184, %v202
    %v205 = vmul.f32 %v203, %v203
    %v206 = vmul.f32 %v204, %v204
    %v207 = vadd.f32 %v205, %v206
    %v208 = vrot.slane %v207, 4
    %v209 = vadd.f32 %v207, %v208
    %v210 = vrot.slane %v209, 2
    %v211 = vadd.f32 %v209, %v210
    %v212 = vrot.slane %v211, 1
    %v213 = vadd.f32 %v211, %v212
    %v214 = vmul.f32 %v213, %v201
    %v215 = vadd.f32 %v214, 1e-05
    %v216 = vrsqrt.pop %v215
    %v217 = vmul.f32 %v216, %v215
    %v218 = vmul.f32 %v217, %v216
    %v219 = vmul.f32 0.5, %v218
    %v220 = vsub.f32 1.5, %v219
    %v221 = vmul.f32 %v216, %v220
    %vm222 = vweird.f32 %v215
    %vm223 = vweird.f32 %v216
    %vm224 = vmor %vm222, %vm223
    %v225 = vsel %vm224, %v216, %v221
    %v226 = vmul.f32 %v203, %v225
    %v227 = vmul.f32 %v204, %v225
    %v229 = vperm.slane %v186, 0
    %v231 = vmul.f32 %v226, %v229
    %v232 = vmul.f32 %v227, %v229
    %v234 = vperm.slane %v187, 0
    %v236 = vadd.f32 %v231, %v234
    %v237 = vadd.f32 %v232, %v234
    %v238 = vmax.f32 %v236, 0.0
    %v239 = vmax.f32 %v237, 0.0
    %v240 = vld [vmem:[#allocation9] sm:$0xff]
    %v241 = vld [vmem:[#allocation9 + $0x8] sm:$0xff]
    %v242 = vld [vmem:[#allocation9 + $0x10] sm:$0xff]
    %v243 = vld [vmem:[#allocation9 + $0x18] sm:$0xff]
    %v244 = vld [vmem:[#allocation9 + $0x20] sm:$0xff]
    %v245 = vld [vmem:[#allocation9 + $0x28] sm:$0xff]
    %v246 = vld [vmem:[#allocation9 + $0x30] sm:$0xff]
    %v247 = vld [vmem:[#allocation9 + $0x38] sm:$0xff]
    %v248 = vld [vmem:[#allocation9 + $0x40] sm:$0xff]
    %v249 = vld [vmem:[#allocation9 + $0x48] sm:$0xff]
    %v250 = vld [vmem:[#allocation9 + $0x50] sm:$0xff]
    %v251 = vld [vmem:[#allocation9 + $0x58] sm:$0xff]
    %v252 = vld [vmem:[#allocation9 + $0x60] sm:$0xff]
    %v253 = vld [vmem:[#allocation9 + $0x68] sm:$0xff]
    %v254 = vld [vmem:[#allocation9 + $0x70] sm:$0xff]
    %v255 = vld [vmem:[#allocation9 + $0x78] sm:$0xff]
    %v256 = vld [vmem:[%s8] sm:$0x1]
    %v258 = vperm.slane %v256, 0
    %260 = vmatpush.msra.mxu0 %v255
    %261 = vmatpush.msra.mxu0 %v254
    %262 = vmatpush.msra.mxu0 %v253
    %263 = vmatpush.msra.mxu0 %v252
    %264 = vmatpush.msra.mxu0 %v251
    %265 = vmatpush.msra.mxu0 %v250
    %266 = vmatpush.msra.mxu0 %v249
    %267 = vmatpush.msra.mxu0 %v248
    %268 = vmatpush.msra.mxu0 %v247
    %269 = vmatpush.msra.mxu0 %v246
    %270 = vmatpush.msra.mxu0 %v245
    %271 = vmatpush.msra.mxu0 %v244
    %272 = vmatpush.msra.mxu0 %v243
    %273 = vmatpush.msra.mxu0 %v242
    %274 = vmatpush.msra.mxu0 %v241
    %275 = vmatpush.msra.mxu0 %v240
    %276 = vmatmul.f32.gmra.mxu0 %v238
    %v277 = vpop.f32.mrf.mxu0
    %v278 = vadd.f32 %v258, %v277
    %279 = vmatmul.f32.gmra.mxu0 %v239
    %v280 = vpop.f32.mrf.mxu0
    %v281 = vadd.f32 %v258, %v280
    %282 = vdwg.mxu0
    %v283 = vld [vmem:[%s9] sm:$0x1]
    %v284 = vld [vmem:[%s10] sm:$0x1]
    %v285 = vadd.f32 %v278, %v281
    %v286 = vrot.slane %v285, 4
    %v287 = vadd.f32 %v285, %v286
    %v288 = vrot.slane %v287, 2
    %v289 = vadd.f32 %v287, %v288
    %v290 = vrot.slane %v289, 1
    %v291 = vadd.f32 %v289, %v290
    %v292 = vmul.f32 %v291, %v201
    %v293 = vsub.f32 %v278, %v292
    %v294 = vsub.f32 %v281, %v292
    %v295 = vmul.f32 %v293, %v293
    %v296 = vmul.f32 %v294, %v294
    %v297 = vadd.f32 %v295, %v296
    %v298 = vrot.slane %v297, 4
    %v299 = vadd.f32 %v297, %v298
    %v300 = vrot.slane %v299, 2
    %v301 = vadd.f32 %v299, %v300
    %v302 = vrot.slane %v301, 1
    %v303 = vadd.f32 %v301, %v302
    %v304 = vmul.f32 %v303, %v201
    %v305 = vadd.f32 %v304, 1e-05
    %v306 = vrsqrt.pop %v305
    %v307 = vmul.f32 %v306, %v305
    %v308 = vmul.f32 %v307, %v306
    %v309 = vmul.f32 0.5, %v308
    %v310 = vsub.f32 1.5, %v309
    %v311 = vmul.f32 %v306, %v310
    %vm312 = vweird.f32 %v305
    %vm313 = vweird.f32 %v306
    %vm314 = vmor %vm312, %vm313
    %v315 = vsel %vm314, %v306, %v311
    %v316 = vmul.f32 %v293, %v315
    %v317 = vmul.f32 %v294, %v315
    %v319 = vperm.slane %v283, 0
    %v321 = vmul.f32 %v316, %v319
    %v322 = vmul.f32 %v317, %v319
    %v324 = vperm.slane %v284, 0
    %v326 = vadd.f32 %v321, %v324
    %v327 = vadd.f32 %v322, %v324
    %v328 = vmax.f32 %v326, 0.0
    %v329 = vmax.f32 %v327, 0.0
    %330 = vst [vmem:[#allocation11] sm:$0xff] %v328
    %331 = vst [vmem:[#allocation11 + $0x8] sm:$0xff] %v329
    // Predicated region
    $region62: #{tpu_custom_call.1} parent=1 // pred_check
      _
    $region63: #{tpu_custom_call.1} parent=1 // pred_check_branch
      %333 = sbr.rel (0) target = $region65
    $region64: #{tpu_custom_call.1} parent=1 // pred_region
      %335 = vsyncadd [#allocation5], 0
      %s336 = sshll.u32 [#allocation11], 4
      %s337 = int_to_ptr.vmem [resolvable:$true] %s336
      %s338 = sshll.u32 %s11, 4
      %s339 = int_to_ptr.hbm [resolvable:$true] %s338
      %344 = dma.vmem_to_hbm [thread:$0]  %s337, 256, %s339, [#allocation5], 128, 128, 8
    $region65: #{tpu_custom_call.1} parent=1 // pred_fallthru
      _
    // Predicated region
    $region66: #{tpu_custom_call.1} parent=1 // pred_check
      _
    $region67: #{tpu_custom_call.1} parent=1 // pred_check_branch
      %346 = sbr.rel (0) target = $region69
    $region68: #{tpu_custom_call.1} parent=1 // pred_region
      %348 = dma.done [#allocation5], 256
    $region69: #{tpu_custom_call.1} parent=1 // pred_fallthru
      _
    %349 = vsyncpa [#allocation4], 1
    %350 = vsyncpa [#allocation7], 1
    %351 = vsyncpa [#allocation10], 1
    %352 = vsyncpa [#allocation5], 1

</llo_original>
